<compile_context>
chip_gen: v6e
topology: v6e:2x2x1
jax: 0.10.0
libtpu: 0.0.40
codegen_flags: <defaults>
</compile_context>

<pallas_src>
import jax
import jax.numpy as jnp
from jax.experimental import pallas as pl
from jax.experimental.pallas import tpu as pltpu


def _ca_net_kernel(x_ref, w_ref, b_ref, eps_ref, out_ref):
    # x_ref:   [tm, T_pad]        (matmul dtype, batch tile)
    # w_ref:   [4, T_pad, E_pad]  (matmul dtype, VMEM-resident across the grid)
    # b_ref:   [4, 1, E_pad]      (f32, VMEM-resident)
    # eps_ref: [tm, E_pad]        (f32)
    # out_ref: [3, tm, E_pad]     (f32: [c_code, mu, logvar] slabs, lane-dense)
    x = x_ref[...]
    eps = eps_ref[...]

    def head(i):
        # [tm, T_pad] @ [T_pad, E_pad] on the MXU, f32 accumulate; bias add on VPU.
        return jnp.dot(x, w_ref[i], preferred_element_type=jnp.float32) + b_ref[i]

    a_mu = head(0)   # linear columns feeding mu (GLU "value" half)
    a_lv = head(1)   # linear columns feeding logvar (GLU "value" half)
    g_mu = head(2)   # GLU gate for mu
    g_lv = head(3)   # GLU gate for logvar

    mu = a_mu * jax.nn.sigmoid(g_mu)
    logvar = a_lv * jax.nn.sigmoid(g_lv)
    c_code = eps * jnp.exp(0.5 * logvar) + mu   # reparametrization

    out_ref[0] = c_code.astype(out_ref.dtype)
    out_ref[1] = mu.astype(out_ref.dtype)
    out_ref[2] = logvar.astype(out_ref.dtype)


def _round_up(x, m):
    return (x + m - 1) // m * m


def ca_net_forward(text_embedding, w, b, eps, *, matmul_dtype=jnp.bfloat16, block_b=None):
    """CA_NET forward.

    text_embedding: [B, t_dim]          f32
    w:              [t_dim, 4*ef_dim]   f32 (transposed nn.Linear weight)
    b:              [4*ef_dim]          f32
    eps:            [B, ef_dim]         f32, N(0,1) noise sampled outside the kernel
    Returns (c_code, mu, logvar), each [B, ef_dim] f32.
    """
    B, T = text_embedding.shape
    four_e = w.shape[1]
    E = four_e // 4

    # Hardware-aligned padded sizes: 8 sublanes for batch, 128 lanes for features.
    E_pad = _round_up(E, 128)
    T_pad = _round_up(T, 128)
    if block_b is None:
        block_b = min(_round_up(B, 8), 256)
    B_pad = _round_up(B, block_b)

    # Pre-split W into the 4 logical column blocks [a_mu | a_lv | g_mu | g_lv] so the
    # kernel never slices along the lane axis. Zero-cost static reshape outside the kernel.
    w4 = jnp.transpose(w.reshape(T, 4, E), (1, 0, 2))                    # [4, T, E]
    w4 = jnp.pad(w4, ((0, 0), (0, T_pad - T), (0, E_pad - E))).astype(matmul_dtype)
    b4 = jnp.pad(b.reshape(4, 1, E), ((0, 0), (0, 0), (0, E_pad - E))).astype(jnp.float32)

    x_p = jnp.pad(text_embedding, ((0, B_pad - B), (0, T_pad - T))).astype(matmul_dtype)
    eps_p = jnp.pad(eps, ((0, B_pad - B), (0, E_pad - E))).astype(jnp.float32)

    grid = (B_pad // block_b,)

    out = pl.pallas_call(
        _ca_net_kernel,
        out_shape=jax.ShapeDtypeStruct((3, B_pad, E_pad), jnp.float32),
        grid=grid,
        in_specs=[
            pl.BlockSpec((block_b, T_pad), lambda i: (i, 0)),      # x: blocked on batch
            pl.BlockSpec((4, T_pad, E_pad), lambda i: (0, 0, 0)),  # W: VMEM-resident
            pl.BlockSpec((4, 1, E_pad), lambda i: (0, 0, 0)),      # b: VMEM-resident
            pl.BlockSpec((block_b, E_pad), lambda i: (i, 0)),      # eps: blocked on batch
        ],
        out_specs=pl.BlockSpec((3, block_b, E_pad), lambda i: (0, i, 0)),
        compiler_params=pltpu.CompilerParams(
            dimension_semantics=("parallel",),   # megacore split of the batch on v7x
        ),
    )(x_p, w4, b4, eps_p)

    # Static slices in the wrapper: free, and keeps the kernel stores lane-dense.
    c_code = out[0, :B, :E]
    mu = out[1, :B, :E]
    logvar = out[2, :B, :E]
    return c_code, mu, logvar


if __name__ == "__main__":
    # Small shapes consistent with the module: batch=2, t_dim=32, ef_dim=16.
    B, T_DIM, EF_DIM = 2, 32, 16

    key = jax.random.PRNGKey(0)
    k_x, k_w, k_b, k_eps = jax.random.split(key, 4)

    x = jax.random.normal(k_x, (B, T_DIM), dtype=jnp.float32)
    # Deterministic synthetic parameters for nn.Linear(t_dim, ef_dim*4, bias=True).
    w = jax.random.normal(k_w, (T_DIM, EF_DIM * 4), dtype=jnp.float32) * 0.05
    b = jax.random.normal(k_b, (EF_DIM * 4,), dtype=jnp.float32) * 0.05
    # eps ~ N(0,1), generated deterministically outside the kernel
    # (matches torch.FloatTensor(...).normal_() semantics, but reproducible).
    eps = jax.random.normal(k_eps, (B, EF_DIM), dtype=jnp.float32)

    # Pure-JAX reference (exactly the PyTorch forward, in f32).
    h_ref = x @ w + b
    glu_ref = h_ref[:, : 2 * EF_DIM] * jax.nn.sigmoid(h_ref[:, 2 * EF_DIM:])
    mu_ref = glu_ref[:, :EF_DIM]
    lv_ref = glu_ref[:, EF_DIM:]
    c_ref = eps * jnp.exp(0.5 * lv_ref) + mu_ref

    # 1) f32 matmul path: bit-faithful semantics check.
    c32, mu32, lv32 = ca_net_forward(x, w, b, eps, matmul_dtype=jnp.float32)
    jax.block_until_ready((c32, mu32, lv32))
    assert jnp.allclose(mu32, mu_ref, atol=1e-5), "mu mismatch (f32)"
    assert jnp.allclose(lv32, lv_ref, atol=1e-5), "logvar mismatch (f32)"
    assert jnp.allclose(c32, c_ref, atol=1e-5), "c_code mismatch (f32)"

    # 2) Default bf16 matmul-operand path (faster MXU + halved weight DMA on v6e/v7x).
    cbf, mubf, lvbf = ca_net_forward(x, w, b, eps)
    jax.block_until_ready((cbf, mubf, lvbf))
    assert jnp.allclose(mubf, mu_ref, atol=5e-2), "mu mismatch (bf16)"
    assert jnp.allclose(lvbf, lv_ref, atol=5e-2), "logvar mismatch (bf16)"
    assert jnp.allclose(cbf, c_ref, atol=5e-2), "c_code mismatch (bf16)"

    print("KERNEL_OK")
</pallas_src>

<mosaic_0001>
module attributes {stable_mosaic.version = 11 : i64} {
  func.func @_ca_net_kernel(%arg0: i32, %arg1: memref<8x128xf32, #tpu.memory_space<vmem>>, %arg2: memref<4x128x128xf32, #tpu.memory_space<vmem>>, %arg3: memref<4x1x128xf32, #tpu.memory_space<vmem>>, %arg4: memref<8x128xf32, #tpu.memory_space<vmem>>, %arg5: memref<3x8x128xf32, #tpu.memory_space<vmem>>) attributes {dimension_semantics = [#tpu.dimension_semantics<parallel>], iteration_bounds = array<i64: 1>, scalar_prefetch = 0 : i64, scratch_operands = 0 : i64, tpu.core_type = #tpu.core_type<tc>, window_params = [{transform_indices = @transform_0, window_bounds = array<i64: 8, 128>}, {pipeline_mode = #tpu.pipeline_mode<synchronous>, transform_indices = @transform_1, window_bounds = array<i64: 4, 128, 128>}, {pipeline_mode = #tpu.pipeline_mode<synchronous>, transform_indices = @transform_2, window_bounds = array<i64: 4, 1, 128>}, {transform_indices = @transform_3, window_bounds = array<i64: 8, 128>}, {transform_indices = @transform_4, window_bounds = array<i64: 3, 8, 128>}]} {
    %c0 = arith.constant 0 : index
    %c0_0 = arith.constant 0 : index
    %0 = vector.load %arg1[%c0, %c0_0] : memref<8x128xf32, #tpu.memory_space<vmem>>, vector<8x128xf32>
    %c0_1 = arith.constant 0 : index
    %c0_2 = arith.constant 0 : index
    %1 = vector.load %arg4[%c0_1, %c0_2] : memref<8x128xf32, #tpu.memory_space<vmem>>, vector<8x128xf32>
    %c0_3 = arith.constant 0 : index
    %c0_4 = arith.constant 0 : index
    %c0_5 = arith.constant 0 : index
    %2 = vector.load %arg2[%c0_3, %c0_4, %c0_5] : memref<4x128x128xf32, #tpu.memory_space<vmem>>, vector<1x128x128xf32>
    %3 = vector.shape_cast %2 : vector<1x128x128xf32> to vector<128x128xf32>
    %cst = arith.constant dense<0.000000e+00> : vector<8x128xf32>
    %4 = tpu.matmul %0, %3, %cst {dimension_numbers = #tpu.dot_dimension_numbers<[1], [0], [0], [1], [0, 0, 1, 1], [], []>} : vector<8x128xf32>, vector<128x128xf32>, vector<8x128xf32> -> vector<8x128xf32>
    %c0_6 = arith.constant 0 : index
    %c0_7 = arith.constant 0 : index
    %c0_8 = arith.constant 0 : index
    %5 = vector.load %arg3[%c0_6, %c0_7, %c0_8] : memref<4x1x128xf32, #tpu.memory_space<vmem>>, vector<1x1x128xf32>
    %6 = vector.shape_cast %5 : vector<1x1x128xf32> to vector<1x128xf32>
    %7 = vector.broadcast %6 : vector<1x128xf32> to vector<8x128xf32>
    %8 = arith.addf %4, %7 : vector<8x128xf32>
    %c1 = arith.constant 1 : index
    %c0_9 = arith.constant 0 : index
    %c0_10 = arith.constant 0 : index
    %9 = vector.load %arg2[%c1, %c0_9, %c0_10] : memref<4x128x128xf32, #tpu.memory_space<vmem>>, vector<1x128x128xf32>
    %10 = vector.shape_cast %9 : vector<1x128x128xf32> to vector<128x128xf32>
    %cst_11 = arith.constant dense<0.000000e+00> : vector<8x128xf32>
    %11 = tpu.matmul %0, %10, %cst_11 {dimension_numbers = #tpu.dot_dimension_numbers<[1], [0], [0], [1], [0, 0, 1, 1], [], []>} : vector<8x128xf32>, vector<128x128xf32>, vector<8x128xf32> -> vector<8x128xf32>
    %c1_12 = arith.constant 1 : index
    %c0_13 = arith.constant 0 : index
    %c0_14 = arith.constant 0 : index
    %12 = vector.load %arg3[%c1_12, %c0_13, %c0_14] : memref<4x1x128xf32, #tpu.memory_space<vmem>>, vector<1x1x128xf32>
    %13 = vector.shape_cast %12 : vector<1x1x128xf32> to vector<1x128xf32>
    %14 = vector.broadcast %13 : vector<1x128xf32> to vector<8x128xf32>
    %15 = arith.addf %11, %14 : vector<8x128xf32>
    %c2 = arith.constant 2 : index
    %c0_15 = arith.constant 0 : index
    %c0_16 = arith.constant 0 : index
    %16 = vector.load %arg2[%c2, %c0_15, %c0_16] : memref<4x128x128xf32, #tpu.memory_space<vmem>>, vector<1x128x128xf32>
    %17 = vector.shape_cast %16 : vector<1x128x128xf32> to vector<128x128xf32>
    %cst_17 = arith.constant dense<0.000000e+00> : vector<8x128xf32>
    %18 = tpu.matmul %0, %17, %cst_17 {dimension_numbers = #tpu.dot_dimension_numbers<[1], [0], [0], [1], [0, 0, 1, 1], [], []>} : vector<8x128xf32>, vector<128x128xf32>, vector<8x128xf32> -> vector<8x128xf32>
    %c2_18 = arith.constant 2 : index
    %c0_19 = arith.constant 0 : index
    %c0_20 = arith.constant 0 : index
    %19 = vector.load %arg3[%c2_18, %c0_19, %c0_20] : memref<4x1x128xf32, #tpu.memory_space<vmem>>, vector<1x1x128xf32>
    %20 = vector.shape_cast %19 : vector<1x1x128xf32> to vector<1x128xf32>
    %21 = vector.broadcast %20 : vector<1x128xf32> to vector<8x128xf32>
    %22 = arith.addf %18, %21 : vector<8x128xf32>
    %c3 = arith.constant 3 : index
    %c0_21 = arith.constant 0 : index
    %c0_22 = arith.constant 0 : index
    %23 = vector.load %arg2[%c3, %c0_21, %c0_22] : memref<4x128x128xf32, #tpu.memory_space<vmem>>, vector<1x128x128xf32>
    %24 = vector.shape_cast %23 : vector<1x128x128xf32> to vector<128x128xf32>
    %cst_23 = arith.constant dense<0.000000e+00> : vector<8x128xf32>
    %25 = tpu.matmul %0, %24, %cst_23 {dimension_numbers = #tpu.dot_dimension_numbers<[1], [0], [0], [1], [0, 0, 1, 1], [], []>} : vector<8x128xf32>, vector<128x128xf32>, vector<8x128xf32> -> vector<8x128xf32>
    %c3_24 = arith.constant 3 : index
    %c0_25 = arith.constant 0 : index
    %c0_26 = arith.constant 0 : index
    %26 = vector.load %arg3[%c3_24, %c0_25, %c0_26] : memref<4x1x128xf32, #tpu.memory_space<vmem>>, vector<1x1x128xf32>
    %27 = vector.shape_cast %26 : vector<1x1x128xf32> to vector<1x128xf32>
    %28 = vector.broadcast %27 : vector<1x128xf32> to vector<8x128xf32>
    %29 = arith.addf %25, %28 : vector<8x128xf32>
    %30 = arith.negf %22 : vector<8x128xf32>
    %31 = math.exp %30 : vector<8x128xf32>
    %cst_27 = arith.constant 1.000000e+00 : f32
    %32 = vector.broadcast %cst_27 : f32 to vector<8x128xf32>
    %33 = arith.addf %32, %31 : vector<8x128xf32>
    %34 = arith.divf %32, %33 : vector<8x128xf32>
    %35 = arith.mulf %8, %34 : vector<8x128xf32>
    %36 = arith.negf %29 : vector<8x128xf32>
    %37 = math.exp %36 : vector<8x128xf32>
    %cst_28 = arith.constant 1.000000e+00 : f32
    %38 = vector.broadcast %cst_28 : f32 to vector<8x128xf32>
    %39 = arith.addf %38, %37 : vector<8x128xf32>
    %40 = arith.divf %38, %39 : vector<8x128xf32>
    %41 = arith.mulf %15, %40 : vector<8x128xf32>
    %cst_29 = arith.constant 5.000000e-01 : f32
    %42 = vector.broadcast %cst_29 : f32 to vector<8x128xf32>
    %43 = arith.mulf %42, %41 : vector<8x128xf32>
    %44 = math.exp %43 : vector<8x128xf32>
    %45 = arith.mulf %1, %44 : vector<8x128xf32>
    %46 = arith.addf %45, %35 : vector<8x128xf32>
    %c0_30 = arith.constant 0 : index
    %c0_31 = arith.constant 0 : index
    %c0_32 = arith.constant 0 : index
    %47 = vector.load %arg5[%c0_30, %c0_31, %c0_32] : memref<3x8x128xf32, #tpu.memory_space<vmem>>, vector<1x8x128xf32>
    %48 = vector.shape_cast %47 : vector<1x8x128xf32> to vector<8x128xf32>
    %49 = vector.shape_cast %46 : vector<8x128xf32> to vector<1x8x128xf32>
    tpu.vector_store %arg5[%c0_30, %c0_31, %c0_32], %49 {strides = array<i32>} : memref<3x8x128xf32, #tpu.memory_space<vmem>>, vector<1x8x128xf32>,
    %c1_33 = arith.constant 1 : index
    %c0_34 = arith.constant 0 : index
    %c0_35 = arith.constant 0 : index
    %50 = vector.load %arg5[%c1_33, %c0_34, %c0_35] : memref<3x8x128xf32, #tpu.memory_space<vmem>>, vector<1x8x128xf32>
    %51 = vector.shape_cast %50 : vector<1x8x128xf32> to vector<8x128xf32>
    %52 = vector.shape_cast %35 : vector<8x128xf32> to vector<1x8x128xf32>
    tpu.vector_store %arg5[%c1_33, %c0_34, %c0_35], %52 {strides = array<i32>} : memref<3x8x128xf32, #tpu.memory_space<vmem>>, vector<1x8x128xf32>,
    %c2_36 = arith.constant 2 : index
    %c0_37 = arith.constant 0 : index
    %c0_38 = arith.constant 0 : index
    %53 = vector.load %arg5[%c2_36, %c0_37, %c0_38] : memref<3x8x128xf32, #tpu.memory_space<vmem>>, vector<1x8x128xf32>
    %54 = vector.shape_cast %53 : vector<1x8x128xf32> to vector<8x128xf32>
    %55 = vector.shape_cast %41 : vector<8x128xf32> to vector<1x8x128xf32>
    tpu.vector_store %arg5[%c2_36, %c0_37, %c0_38], %55 {strides = array<i32>} : memref<3x8x128xf32, #tpu.memory_space<vmem>>, vector<1x8x128xf32>,
    return
  }
  func.func @transform_0(%arg0: i32) -> (i32, i32) {
    %c0_i32 = arith.constant 0 : i32
    %c0_i32_0 = arith.constant 0 : i32
    return %arg0, %c0_i32 : i32, i32
  }
  func.func @transform_1(%arg0: i32) -> (i32, i32, i32) {
    %c0_i32 = arith.constant 0 : i32
    %c0_i32_0 = arith.constant 0 : i32
    %c0_i32_1 = arith.constant 0 : i32
    %c0_i32_2 = arith.constant 0 : i32
    return %c0_i32, %c0_i32_0, %c0_i32_1 : i32, i32, i32
  }
  func.func @transform_2(%arg0: i32) -> (i32, i32, i32) {
    %c0_i32 = arith.constant 0 : i32
    %c0_i32_0 = arith.constant 0 : i32
    %c0_i32_1 = arith.constant 0 : i32
    %c0_i32_2 = arith.constant 0 : i32
    return %c0_i32, %c0_i32_0, %c0_i32_1 : i32, i32, i32
  }
  func.func @transform_3(%arg0: i32) -> (i32, i32) {
    %c0_i32 = arith.constant 0 : i32
    %c0_i32_0 = arith.constant 0 : i32
    return %arg0, %c0_i32 : i32, i32
  }
  func.func @transform_4(%arg0: i32) -> (i32, i32, i32) {
    %c0_i32 = arith.constant 0 : i32
    %c0_i32_0 = arith.constant 0 : i32
    %c0_i32_1 = arith.constant 0 : i32
    return %c0_i32, %arg0, %c0_i32_0 : i32, i32, i32
  }
}

</mosaic_0001>

<llo_original>
// kernel: tpu_custom_call.1
$region0: #{tpu_custom_call.1}
  #allocation0 [shape = 'u32[]', space=smem, size = 0x4, offset = 0x4, fixed_abs, tag = 'smem constant byte address 0x4 - core index']
  #allocation1 [shape = 'u32[144,128]{1,0:T(1,128)}', space=vmem, size = 0x12000, scoped, tag = 'internal scratch']
  %s0 = inlined_call_operand.hbm [shape: f32[8,128], index: 0, kind: input, shape index: {}]
  %s1 = inlined_call_operand.hbm [shape: f32[4,128,128], index: 1, kind: input, shape index: {}]
  %s2 = inlined_call_operand.hbm [shape: f32[4,1,128], index: 2, kind: input, shape index: {}]
  %s3 = inlined_call_operand.hbm [shape: f32[8,128], index: 3, kind: input, shape index: {}]
  %s4 = inlined_call_operand.hbm [shape: f32[3,8,128], index: 4, kind: output, shape index: {}]
  %s5 = sld [smem:[#allocation0]]
  $region42: #{tpu_custom_call.1} parent=0
    _
  %s7 = ssub.s32 1, %s5
  %s8 = scalar_select 0, %s7, %s5
  $region1: #{tpu_custom_call.1} parent=0
    #allocation2 [shape = 'u8[4096]{0}', space=vmem, size = 0x1000, scoped, tag = 'input window, operand 0, single buffered']
    #allocation3 [shape = 's32[1]{0}', space=sflag, size = 0x4, scoped, tag = 'scoped memory for tpu_custom_call.1']
    #allocation4 [shape = 's32[1]{0}', space=sflag, size = 0x4, scoped, tag = 'scoped memory for tpu_custom_call.1']
    #allocation5 [shape = 'u8[262144]{0}', space=vmem, size = 0x40000, scoped, tag = 'input window, operand 1, single buffered']
    #allocation6 [shape = 's32[1]{0}', space=sflag, size = 0x4, scoped, tag = 'scoped memory for tpu_custom_call.1']
    #allocation7 [shape = 'u8[2048]{0}', space=vmem, size = 0x800, scoped, tag = 'input window, operand 2, single buffered']
    #allocation8 [shape = 'u8[4096]{0}', space=vmem, size = 0x1000, scoped, tag = 'input window, operand 3, single buffered']
    #allocation9 [shape = 's32[1]{0}', space=sflag, size = 0x4, scoped, tag = 'scoped memory for tpu_custom_call.1']
    #allocation10 [shape = 'u8[12288]{0}', space=vmem, size = 0x3000, scoped, tag = 'output window, operand 0, single buffered']
    %9 = vsyncpa [#allocation3], 0
    %10 = vsyncpa [#allocation6], 0
    %11 = vsyncpa [#allocation9], 0
    %12 = vsyncpa [#allocation4], 0
    // Predicated region
    $region2: #{tpu_custom_call.1} parent=1 // pred_check
      _
    $region3: #{tpu_custom_call.1} parent=1 // pred_check_branch
      %14 = sbr.rel (0) target = $region5
    $region4: #{tpu_custom_call.1} parent=1 // pred_region
      %s16 = ssub.s32 128, 128
      %17 = vsyncadd [#allocation3], %s16
      %s19 = sshll.u32 [#allocation2], 4
      %s20 = int_to_ptr.vmem [resolvable:$true] %s19
      %22 = dma.hbm_to_vmem [thread:$0]  %s0, 128, %s20, [#allocation3]
    $region5: #{tpu_custom_call.1} parent=1 // pred_fallthru
      _
    // Predicated region
    $region6: #{tpu_custom_call.1} parent=1 // pred_check
      _
    $region7: #{tpu_custom_call.1} parent=1 // pred_check_branch
      %24 = sbr.rel (0) target = $region9
    $region8: #{tpu_custom_call.1} parent=1 // pred_region
      %s26 = ssub.s32 8192, 8192
      %27 = vsyncadd [#allocation6], %s26
      %s28 = sshll.u32 [#allocation5], 4
      %s29 = int_to_ptr.vmem [resolvable:$true] %s28
      %34 = dma.hbm_to_vmem [thread:$0]  %s1, 8192, %s29, [#allocation6], 128, 128, 8
    $region9: #{tpu_custom_call.1} parent=1 // pred_fallthru
      _
    // Predicated region
    $region10: #{tpu_custom_call.1} parent=1 // pred_check
      _
    $region11: #{tpu_custom_call.1} parent=1 // pred_check_branch
      %36 = sbr.rel (0) target = $region13
    $region12: #{tpu_custom_call.1} parent=1 // pred_region
      %s38 = ssub.s32 64, 64
      %39 = vsyncadd [#allocation6], %s38
      %s40 = sshll.u32 [#allocation7], 4
      %s41 = int_to_ptr.vmem [resolvable:$true] %s40
      %46 = dma.hbm_to_vmem [thread:$0]  %s2, 64, %s41, [#allocation6], 16, 16, 1
    $region13: #{tpu_custom_call.1} parent=1 // pred_fallthru
      _
    // Predicated region
    $region14: #{tpu_custom_call.1} parent=1 // pred_check
      _
    $region15: #{tpu_custom_call.1} parent=1 // pred_check_branch
      %48 = sbr.rel (0) target = $region17
    $region16: #{tpu_custom_call.1} parent=1 // pred_region
      %s50 = ssub.s32 128, 128
      %51 = vsyncadd [#allocation9], %s50
      %s53 = sshll.u32 [#allocation8], 4
      %s54 = int_to_ptr.vmem [resolvable:$true] %s53
      %56 = dma.hbm_to_vmem [thread:$0]  %s3, 128, %s54, [#allocation9]
    $region17: #{tpu_custom_call.1} parent=1 // pred_fallthru
      _
    // Predicated region
    $region18: #{tpu_custom_call.1} parent=1 // pred_check
      _
    $region19: #{tpu_custom_call.1} parent=1 // pred_check_branch
      %58 = sbr.rel (0) target = $region21
    $region20: #{tpu_custom_call.1} parent=1 // pred_region
      %59 = dma.done [#allocation3], 128
    $region21: #{tpu_custom_call.1} parent=1 // pred_fallthru
      _
    // Predicated region
    $region22: #{tpu_custom_call.1} parent=1 // pred_check
      _
    $region23: #{tpu_custom_call.1} parent=1 // pred_check_branch
      %61 = sbr.rel (0) target = $region25
    $region24: #{tpu_custom_call.1} parent=1 // pred_region
      %62 = dma.done [#allocation6], 8192
    $region25: #{tpu_custom_call.1} parent=1 // pred_fallthru
      _
    // Predicated region
    $region26: #{tpu_custom_call.1} parent=1 // pred_check
      _
    $region27: #{tpu_custom_call.1} parent=1 // pred_check_branch
      %64 = sbr.rel (0) target = $region29
    $region28: #{tpu_custom_call.1} parent=1 // pred_region
      %65 = dma.done [#allocation6], 64
    $region29: #{tpu_custom_call.1} parent=1 // pred_fallthru
      _
    // Predicated region
    $region30: #{tpu_custom_call.1} parent=1 // pred_check
      _
    $region31: #{tpu_custom_call.1} parent=1 // pred_check_branch
      %67 = sbr.rel (0) target = $region33
    $region32: #{tpu_custom_call.1} parent=1 // pred_region
      %68 = dma.done [#allocation9], 128
    $region33: #{tpu_custom_call.1} parent=1 // pred_fallthru
      _
    %v69 = vld [vmem:[#allocation2] sm:$0xff]
    %v70 = vld [vmem:[#allocation8] sm:$0xff]
    %v71 = vld [vmem:[#allocation5] sm:$0xff]
    %v72 = vld [vmem:[#allocation5 + $0x8] sm:$0xff]
    %v73 = vld [vmem:[#allocation5 + $0x10] sm:$0xff]
    %v74 = vld [vmem:[#allocation5 + $0x18] sm:$0xff]
    %v75 = vld [vmem:[#allocation5 + $0x20] sm:$0xff]
    %v76 = vld [vmem:[#allocation5 + $0x28] sm:$0xff]
    %v77 = vld [vmem:[#allocation5 + $0x30] sm:$0xff]
    %v78 = vld [vmem:[#allocation5 + $0x38] sm:$0xff]
    %v79 = vld [vmem:[#allocation5 + $0x40] sm:$0xff]
    %v80 = vld [vmem:[#allocation5 + $0x48] sm:$0xff]
    %v81 = vld [vmem:[#allocation5 + $0x50] sm:$0xff]
    %v82 = vld [vmem:[#allocation5 + $0x58] sm:$0xff]
    %v83 = vld [vmem:[#allocation5 + $0x60] sm:$0xff]
    %v84 = vld [vmem:[#allocation5 + $0x68] sm:$0xff]
    %v85 = vld [vmem:[#allocation5 + $0x70] sm:$0xff]
    %v86 = vld [vmem:[#allocation5 + $0x78] sm:$0xff]
    %v87 = vld [vmem:[#allocation7] sm:$0x1]
    %v89 = vlaneseq
    %v90 = vshrl.u32 %v89, 7
    %v91 = vsub.s32 0, %v90
    %v92 = vrot.slane %v87, %v91
    %94 = vmatprep.subr.mxu0 0.0
    %95 = vmatpush1.msra.mxu0 %v86
    %96 = vmatprep.subr.mxu0 0.0
    %97 = vmatpush1.msra.mxu0 %v85
    %98 = vmatprep.subr.mxu0 0.0
    %99 = vmatpush1.msra.mxu0 %v84
    %100 = vmatprep.subr.mxu0 0.0
    %101 = vmatpush1.msra.mxu0 %v83
    %102 = vmatprep.subr.mxu0 0.0
    %103 = vmatpush1.msra.mxu0 %v82
    %104 = vmatprep.subr.mxu0 0.0
    %105 = vmatpush1.msra.mxu0 %v81
    %106 = vmatprep.subr.mxu0 0.0
    %107 = vmatpush1.msra.mxu0 %v80
    %108 = vmatprep.subr.mxu0 0.0
    %109 = vmatpush1.msra.mxu0 %v79
    %110 = vmatprep.subr.mxu0 0.0
    %111 = vmatpush1.msra.mxu0 %v78
    %112 = vmatprep.subr.mxu0 0.0
    %113 = vmatpush1.msra.mxu0 %v77
    %114 = vmatprep.subr.mxu0 0.0
    %115 = vmatpush1.msra.mxu0 %v76
    %116 = vmatprep.subr.mxu0 0.0
    %117 = vmatpush1.msra.mxu0 %v75
    %118 = vmatprep.subr.mxu0 0.0
    %119 = vmatpush1.msra.mxu0 %v74
    %120 = vmatprep.subr.mxu0 0.0
    %121 = vmatpush1.msra.mxu0 %v73
    %122 = vmatprep.subr.mxu0 0.0
    %123 = vmatpush1.msra.mxu0 %v72
    %124 = vmatprep.subr.mxu0 0.0
    %125 = vmatpush1.msra.mxu0 %v71
    %126 = vmatprep.subr.mxu0 0.0
    %127 = vmatpush2.msra.mxu0 0.0
    %128 = vmatprep.subr.mxu0 0.0
    %129 = vmatpush2.msra.mxu0 0.0
    %130 = vmatprep.subr.mxu0 0.0
    %131 = vmatpush2.msra.mxu0 0.0
    %132 = vmatprep.subr.mxu0 0.0
    %133 = vmatpush2.msra.mxu0 0.0
    %134 = vmatprep.subr.mxu0 0.0
    %135 = vmatpush2.msra.mxu0 0.0
    %136 = vmatprep.subr.mxu0 0.0
    %137 = vmatpush2.msra.mxu0 0.0
    %138 = vmatprep.subr.mxu0 0.0
    %139 = vmatpush2.msra.mxu0 0.0
    %140 = vmatprep.subr.mxu0 0.0
    %141 = vmatpush2.msra.mxu0 0.0
    %142 = vmatprep.subr.mxu0 0.0
    %143 = vmatpush2.msra.mxu0 0.0
    %144 = vmatprep.subr.mxu0 0.0
    %145 = vmatpush2.msra.mxu0 0.0
    %146 = vmatprep.subr.mxu0 0.0
    %147 = vmatpush2.msra.mxu0 0.0
    %148 = vmatprep.subr.mxu0 0.0
    %149 = vmatpush2.msra.mxu0 0.0
    %150 = vmatprep.subr.mxu0 0.0
    %151 = vmatpush2.msra.mxu0 0.0
    %152 = vmatprep.subr.mxu0 0.0
    %153 = vmatpush2.msra.mxu0 0.0
    %154 = vmatprep.subr.mxu0 0.0
    %155 = vmatpush2.msra.mxu0 0.0
    %156 = vmatprep.subr.mxu0 0.0
    %157 = vmatpush2.msra.mxu0 0.0
    %158 = vmatprep.mubr.f32.mxu0 0.0
    %159 = vmatmul.mubr.f32.gmra.mxu0 %v69
    %v160 = vpop.f32.mrf.mxu0
    %v161 = vadd.f32 %v92, %v160
    %v162 = vpop.f32.mrf.mxu0
    %163 = vdwg.mxu0
    %s164 = scalar_lea.vmem [#allocation5], 128
    %v165 = vld [vmem:[%s164] sm:$0xff]
    %v166 = vld [vmem:[%s164 + $0x8] sm:$0xff]
    %v167 = vld [vmem:[%s164 + $0x10] sm:$0xff]
    %v168 = vld [vmem:[%s164 + $0x18] sm:$0xff]
    %v169 = vld [vmem:[%s164 + $0x20] sm:$0xff]
    %v170 = vld [vmem:[%s164 + $0x28] sm:$0xff]
    %v171 = vld [vmem:[%s164 + $0x30] sm:$0xff]
    %v172 = vld [vmem:[%s164 + $0x38] sm:$0xff]
    %v173 = vld [vmem:[%s164 + $0x40] sm:$0xff]
    %v174 = vld [vmem:[%s164 + $0x48] sm:$0xff]
    %v175 = vld [vmem:[%s164 + $0x50] sm:$0xff]
    %v176 = vld [vmem:[%s164 + $0x58] sm:$0xff]
    %v177 = vld [vmem:[%s164 + $0x60] sm:$0xff]
    %v178 = vld [vmem:[%s164 + $0x68] sm:$0xff]
    %v179 = vld [vmem:[%s164 + $0x70] sm:$0xff]
    %v180 = vld [vmem:[%s164 + $0x78] sm:$0xff]
    %s181 = scalar_lea.vmem [#allocation7], 1
    %v182 = vld [vmem:[%s181] sm:$0x1]
    %v184 = vlaneseq
    %v185 = vshrl.u32 %v184, 7
    %v186 = vsub.s32 0, %v185
    %v187 = vrot.slane %v182, %v186
    %189 = vmatprep.subr.mxu0 0.0
    %190 = vmatpush1.msra.mxu0 %v180
    %191 = vmatprep.subr.mxu0 0.0
    %192 = vmatpush1.msra.mxu0 %v179
    %193 = vmatprep.subr.mxu0 0.0
    %194 = vmatpush1.msra.mxu0 %v178
    %195 = vmatprep.subr.mxu0 0.0
    %196 = vmatpush1.msra.mxu0 %v177
    %197 = vmatprep.subr.mxu0 0.0
    %198 = vmatpush1.msra.mxu0 %v176
    %199 = vmatprep.subr.mxu0 0.0
    %200 = vmatpush1.msra.mxu0 %v175
    %201 = vmatprep.subr.mxu0 0.0
    %202 = vmatpush1.msra.mxu0 %v174
    %203 = vmatprep.subr.mxu0 0.0
    %204 = vmatpush1.msra.mxu0 %v173
    %205 = vmatprep.subr.mxu0 0.0
    %206 = vmatpush1.msra.mxu0 %v172
    %207 = vmatprep.subr.mxu0 0.0
    %208 = vmatpush1.msra.mxu0 %v171
    %209 = vmatprep.subr.mxu0 0.0
    %210 = vmatpush1.msra.mxu0 %v170
    %211 = vmatprep.subr.mxu0 0.0
    %212 = vmatpush1.msra.mxu0 %v169
    %213 = vmatprep.subr.mxu0 0.0
    %214 = vmatpush1.msra.mxu0 %v168
    %215 = vmatprep.subr.mxu0 0.0
    %216 = vmatpush1.msra.mxu0 %v167
    %217 = vmatprep.subr.mxu0 0.0
    %218 = vmatpush1.msra.mxu0 %v166
    %219 = vmatprep.subr.mxu0 0.0
    %220 = vmatpush1.msra.mxu0 %v165
    %221 = vmatprep.subr.mxu0 0.0
    %222 = vmatpush2.msra.mxu0 0.0
    %223 = vmatprep.subr.mxu0 0.0
    %224 = vmatpush2.msra.mxu0 0.0
    %225 = vmatprep.subr.mxu0 0.0
    %226 = vmatpush2.msra.mxu0 0.0
    %227 = vmatprep.subr.mxu0 0.0
    %228 = vmatpush2.msra.mxu0 0.0
    %229 = vmatprep.subr.mxu0 0.0
    %230 = vmatpush2.msra.mxu0 0.0
    %231 = vmatprep.subr.mxu0 0.0
    %232 = vmatpush2.msra.mxu0 0.0
    %233 = vmatprep.subr.mxu0 0.0
    %234 = vmatpush2.msra.mxu0 0.0
    %235 = vmatprep.subr.mxu0 0.0
    %236 = vmatpush2.msra.mxu0 0.0
    %237 = vmatprep.subr.mxu0 0.0
    %238 = vmatpush2.msra.mxu0 0.0
    %239 = vmatprep.subr.mxu0 0.0
    %240 = vmatpush2.msra.mxu0 0.0
    %241 = vmatprep.subr.mxu0 0.0
    %242 = vmatpush2.msra.mxu0 0.0
    %243 = vmatprep.subr.mxu0 0.0
    %244 = vmatpush2.msra.mxu0 0.0
    %245 = vmatprep.subr.mxu0 0.0
    %246 = vmatpush2.msra.mxu0 0.0
    %247 = vmatprep.subr.mxu0 0.0
    %248 = vmatpush2.msra.mxu0 0.0
    %249 = vmatprep.subr.mxu0 0.0
    %250 = vmatpush2.msra.mxu0 0.0
    %251 = vmatprep.subr.mxu0 0.0
    %252 = vmatpush2.msra.mxu0 0.0
    %253 = vmatprep.mubr.f32.mxu0 0.0
    %254 = vmatmul.mubr.f32.gmra.mxu0 %v69
    %v255 = vpop.f32.mrf.mxu0
    %v256 = vadd.f32 %v187, %v255
    %v257 = vpop.f32.mrf.mxu0
    %258 = vdwg.mxu0
    %s259 = scalar_lea.vmem [#allocation5], 256
    %v260 = vld [vmem:[%s259] sm:$0xff]
    %v261 = vld [vmem:[%s259 + $0x8] sm:$0xff]
    %v262 = vld [vmem:[%s259 + $0x10] sm:$0xff]
    %v263 = vld [vmem:[%s259 + $0x18] sm:$0xff]
    %v264 = vld [vmem:[%s259 + $0x20] sm:$0xff]
    %v265 = vld [vmem:[%s259 + $0x28] sm:$0xff]
    %v266 = vld [vmem:[%s259 + $0x30] sm:$0xff]
    %v267 = vld [vmem:[%s259 + $0x38] sm:$0xff]
    %v268 = vld [vmem:[%s259 + $0x40] sm:$0xff]
    %v269 = vld [vmem:[%s259 + $0x48] sm:$0xff]
    %v270 = vld [vmem:[%s259 + $0x50] sm:$0xff]
    %v271 = vld [vmem:[%s259 + $0x58] sm:$0xff]
    %v272 = vld [vmem:[%s259 + $0x60] sm:$0xff]
    %v273 = vld [vmem:[%s259 + $0x68] sm:$0xff]
    %v274 = vld [vmem:[%s259 + $0x70] sm:$0xff]
    %v275 = vld [vmem:[%s259 + $0x78] sm:$0xff]
    %s276 = scalar_lea.vmem [#allocation7], 2
    %v277 = vld [vmem:[%s276] sm:$0x1]
    %v279 = vlaneseq
    %v280 = vshrl.u32 %v279, 7
    %v281 = vsub.s32 0, %v280
    %v282 = vrot.slane %v277, %v281
    %284 = vmatprep.subr.mxu0 0.0
    %285 = vmatpush1.msra.mxu0 %v275
    %286 = vmatprep.subr.mxu0 0.0
    %287 = vmatpush1.msra.mxu0 %v274
    %288 = vmatprep.subr.mxu0 0.0
    %289 = vmatpush1.msra.mxu0 %v273
    %290 = vmatprep.subr.mxu0 0.0
    %291 = vmatpush1.msra.mxu0 %v272
    %292 = vmatprep.subr.mxu0 0.0
    %293 = vmatpush1.msra.mxu0 %v271
    %294 = vmatprep.subr.mxu0 0.0
    %295 = vmatpush1.msra.mxu0 %v270
    %296 = vmatprep.subr.mxu0 0.0
    %297 = vmatpush1.msra.mxu0 %v269
    %298 = vmatprep.subr.mxu0 0.0
    %299 = vmatpush1.msra.mxu0 %v268
    %300 = vmatprep.subr.mxu0 0.0
    %301 = vmatpush1.msra.mxu0 %v267
    %302 = vmatprep.subr.mxu0 0.0
    %303 = vmatpush1.msra.mxu0 %v266
    %304 = vmatprep.subr.mxu0 0.0
    %305 = vmatpush1.msra.mxu0 %v265
    %306 = vmatprep.subr.mxu0 0.0
    %307 = vmatpush1.msra.mxu0 %v264
    %308 = vmatprep.subr.mxu0 0.0
    %309 = vmatpush1.msra.mxu0 %v263
    %310 = vmatprep.subr.mxu0 0.0
    %311 = vmatpush1.msra.mxu0 %v262
    %312 = vmatprep.subr.mxu0 0.0
    %313 = vmatpush1.msra.mxu0 %v261
    %314 = vmatprep.subr.mxu0 0.0
    %315 = vmatpush1.msra.mxu0 %v260
    %316 = vmatprep.subr.mxu0 0.0
    %317 = vmatpush2.msra.mxu0 0.0
    %318 = vmatprep.subr.mxu0 0.0
    %319 = vmatpush2.msra.mxu0 0.0
    %320 = vmatprep.subr.mxu0 0.0
    %321 = vmatpush2.msra.mxu0 0.0
    %322 = vmatprep.subr.mxu0 0.0
    %323 = vmatpush2.msra.mxu0 0.0
    %324 = vmatprep.subr.mxu0 0.0
    %325 = vmatpush2.msra.mxu0 0.0
    %326 = vmatprep.subr.mxu0 0.0
    %327 = vmatpush2.msra.mxu0 0.0
    %328 = vmatprep.subr.mxu0 0.0
    %329 = vmatpush2.msra.mxu0 0.0
    %330 = vmatprep.subr.mxu0 0.0
    %331 = vmatpush2.msra.mxu0 0.0
    %332 = vmatprep.subr.mxu0 0.0
    %333 = vmatpush2.msra.mxu0 0.0
    %334 = vmatprep.subr.mxu0 0.0
    %335 = vmatpush2.msra.mxu0 0.0
    %336 = vmatprep.subr.mxu0 0.0
    %337 = vmatpush2.msra.mxu0 0.0
    %338 = vmatprep.subr.mxu0 0.0
    %339 = vmatpush2.msra.mxu0 0.0
    %340 = vmatprep.subr.mxu0 0.0
    %341 = vmatpush2.msra.mxu0 0.0
    %342 = vmatprep.subr.mxu0 0.0
    %343 = vmatpush2.msra.mxu0 0.0
    %344 = vmatprep.subr.mxu0 0.0
    %345 = vmatpush2.msra.mxu0 0.0
    %346 = vmatprep.subr.mxu0 0.0
    %347 = vmatpush2.msra.mxu0 0.0
    %348 = vmatprep.mubr.f32.mxu0 0.0
    %349 = vmatmul.mubr.f32.gmra.mxu0 %v69
    %v350 = vpop.f32.mrf.mxu0
    %v351 = vadd.f32 %v282, %v350
    %v352 = vpop.f32.mrf.mxu0
    %353 = vdwg.mxu0
    %s354 = scalar_lea.vmem [#allocation5], 384
    %v355 = vld [vmem:[%s354] sm:$0xff]
    %v356 = vld [vmem:[%s354 + $0x8] sm:$0xff]
    %v357 = vld [vmem:[%s354 + $0x10] sm:$0xff]
    %v358 = vld [vmem:[%s354 + $0x18] sm:$0xff]
    %v359 = vld [vmem:[%s354 + $0x20] sm:$0xff]
    %v360 = vld [vmem:[%s354 + $0x28] sm:$0xff]
    %v361 = vld [vmem:[%s354 + $0x30] sm:$0xff]
    %v362 = vld [vmem:[%s354 + $0x38] sm:$0xff]
    %v363 = vld [vmem:[%s354 + $0x40] sm:$0xff]
    %v364 = vld [vmem:[%s354 + $0x48] sm:$0xff]
    %v365 = vld [vmem:[%s354 + $0x50] sm:$0xff]
    %v366 = vld [vmem:[%s354 + $0x58] sm:$0xff]
    %v367 = vld [vmem:[%s354 + $0x60] sm:$0xff]
    %v368 = vld [vmem:[%s354 + $0x68] sm:$0xff]
    %v369 = vld [vmem:[%s354 + $0x70] sm:$0xff]
    %v370 = vld [vmem:[%s354 + $0x78] sm:$0xff]
    %s371 = scalar_lea.vmem [#allocation7], 3
    %v372 = vld [vmem:[%s371] sm:$0x1]
    %v374 = vlaneseq
    %v375 = vshrl.u32 %v374, 7
    %v376 = vsub.s32 0, %v375
    %v377 = vrot.slane %v372, %v376
    %379 = vmatprep.subr.mxu0 0.0
    %380 = vmatpush1.msra.mxu0 %v370
    %381 = vmatprep.subr.mxu0 0.0
    %382 = vmatpush1.msra.mxu0 %v369
    %383 = vmatprep.subr.mxu0 0.0
    %384 = vmatpush1.msra.mxu0 %v368
    %385 = vmatprep.subr.mxu0 0.0
    %386 = vmatpush1.msra.mxu0 %v367
    %387 = vmatprep.subr.mxu0 0.0
    %388 = vmatpush1.msra.mxu0 %v366
    %389 = vmatprep.subr.mxu0 0.0
    %390 = vmatpush1.msra.mxu0 %v365
    %391 = vmatprep.subr.mxu0 0.0
    %392 = vmatpush1.msra.mxu0 %v364
    %393 = vmatprep.subr.mxu0 0.0
    %394 = vmatpush1.msra.mxu0 %v363
    %395 = vmatprep.subr.mxu0 0.0
    %396 = vmatpush1.msra.mxu0 %v362
    %397 = vmatprep.subr.mxu0 0.0
    %398 = vmatpush1.msra.mxu0 %v361
    %399 = vmatprep.subr.mxu0 0.0
    %400 = vmatpush1.msra.mxu0 %v360
    %401 = vmatprep.subr.mxu0 0.0
    %402 = vmatpush1.msra.mxu0 %v359
    %403 = vmatprep.subr.mxu0 0.0
    %404 = vmatpush1.msra.mxu0 %v358
    %405 = vmatprep.subr.mxu0 0.0
    %406 = vmatpush1.msra.mxu0 %v357
    %407 = vmatprep.subr.mxu0 0.0
    %408 = vmatpush1.msra.mxu0 %v356
    %409 = vmatprep.subr.mxu0 0.0
    %410 = vmatpush1.msra.mxu0 %v355
    %411 = vmatprep.subr.mxu0 0.0
    %412 = vmatpush2.msra.mxu0 0.0
    %413 = vmatprep.subr.mxu0 0.0
    %414 = vmatpush2.msra.mxu0 0.0
    %415 = vmatprep.subr.mxu0 0.0
    %416 = vmatpush2.msra.mxu0 0.0
    %417 = vmatprep.subr.mxu0 0.0
    %418 = vmatpush2.msra.mxu0 0.0
    %419 = vmatprep.subr.mxu0 0.0
    %420 = vmatpush2.msra.mxu0 0.0
    %421 = vmatprep.subr.mxu0 0.0
    %422 = vmatpush2.msra.mxu0 0.0
    %423 = vmatprep.subr.mxu0 0.0
    %424 = vmatpush2.msra.mxu0 0.0
    %425 = vmatprep.subr.mxu0 0.0
    %426 = vmatpush2.msra.mxu0 0.0
    %427 = vmatprep.subr.mxu0 0.0
    %428 = vmatpush2.msra.mxu0 0.0
    %429 = vmatprep.subr.mxu0 0.0
    %430 = vmatpush2.msra.mxu0 0.0
    %431 = vmatprep.subr.mxu0 0.0
    %432 = vmatpush2.msra.mxu0 0.0
    %433 = vmatprep.subr.mxu0 0.0
    %434 = vmatpush2.msra.mxu0 0.0
    %435 = vmatprep.subr.mxu0 0.0
    %436 = vmatpush2.msra.mxu0 0.0
    %437 = vmatprep.subr.mxu0 0.0
    %438 = vmatpush2.msra.mxu0 0.0
    %439 = vmatprep.subr.mxu0 0.0
    %440 = vmatpush2.msra.mxu0 0.0
    %441 = vmatprep.subr.mxu0 0.0
    %442 = vmatpush2.msra.mxu0 0.0
    %443 = vmatprep.mubr.f32.mxu0 0.0
    %444 = vmatmul.mubr.f32.gmra.mxu0 %v69
    %v445 = vpop.f32.mrf.mxu0
    %v446 = vadd.f32 %v377, %v445
    %v447 = vpop.f32.mrf.mxu0
    %448 = vdwg.mxu0
    %v449 = vxor.u32 %v351, 2147483648
    %v450 = vmul.f32 %v449, 1.442695
    %v451 = vpow.pop %v450
    %v452 = vadd.f32 %v451, 1.0
    %v453 = vrcp.pop %v452
    %v454 = vmul.f32 1.0, %v453
    %v455 = vmul.f32 %v161, %v454
    %v456 = vxor.u32 %v446, 2147483648
    %v457 = vmul.f32 %v456, 1.442695
    %v458 = vpow.pop %v457
    %v459 = vadd.f32 %v458, 1.0
    %v460 = vrcp.pop %v459
    %v461 = vmul.f32 1.0, %v460
    %v462 = vmul.f32 %v256, %v461
    %v463 = vmul.f32 %v462, 0.5
    %v464 = vmul.f32 %v463, 1.442695
    %v465 = vpow.pop %v464
    %v466 = vmul.f32 %v70, %v465
    %v467 = vadd.f32 %v466, %v455
    %468 = vst [vmem:[#allocation10] sm:$0xff] %v467
    %s469 = scalar_lea.vmem [#allocation10], 8
    %470 = vst [vmem:[%s469] sm:$0xff] %v455
    %s471 = scalar_lea.vmem [#allocation10], 16
    %472 = vst [vmem:[%s471] sm:$0xff] %v462
    // Predicated region
    $region34: #{tpu_custom_call.1} parent=1 // pred_check
      _
    $region35: #{tpu_custom_call.1} parent=1 // pred_check_branch
      %474 = sbr.rel (0) target = $region37
    $region36: #{tpu_custom_call.1} parent=1 // pred_region
      %s476 = ssub.s32 384, 384
      %477 = vsyncadd [#allocation4], %s476
      %s478 = sshll.u32 [#allocation10], 4
      %s479 = int_to_ptr.vmem [resolvable:$true] %s478
      %484 = dma.vmem_to_hbm [thread:$0]  %s479, 384, %s4, [#allocation4], 128, 128, 8
    $region37: #{tpu_custom_call.1} parent=1 // pred_fallthru
      _
    // Predicated region
    $region38: #{tpu_custom_call.1} parent=1 // pred_check
      _
    $region39: #{tpu_custom_call.1} parent=1 // pred_check_branch
      %486 = sbr.rel (0) target = $region41
    $region40: #{tpu_custom_call.1} parent=1 // pred_region
      %487 = dma.done [#allocation4], 384
    $region41: #{tpu_custom_call.1} parent=1 // pred_fallthru
      _
    %488 = vsyncpa [#allocation3], 1
    %489 = vsyncpa [#allocation6], 1
    %490 = vsyncpa [#allocation9], 1
    %491 = vsyncpa [#allocation4], 1

</llo_original>
